<compile_context>
chip_gen: v5e
topology: v5e:2x2
jax: 0.10.0
libtpu: 0.0.40
codegen_flags: <defaults>
</compile_context>

<pallas_src>
import functools

import jax
import jax.numpy as jnp
from jax import lax
from jax.experimental import pallas as pl
from jax.experimental.pallas import tpu as pltpu

EPS = 1e-5


def _bn_relu_conv_kernel(x_ref, scale_ref, shift_ref, w_ref, b_ref, o_ref, *,
                         kernel_size, stride, pad, seq_len, l_eff, out_len,
                         mxu_dtype):
    # Per grid step (one block of B_blk batch elements, packed along lanes):
    #   x_ref:     (C_in, B_blk*L_eff)   raw activations, f32
    #   scale_ref: (C_in, 1)             folded BN scale = gamma*rsqrt(var+eps)
    #   shift_ref: (C_in, 1)             folded BN shift = beta - mean*scale
    #   w_ref:     (C_out, K*C_in)       im2col conv weight (MXU dtype)
    #   b_ref:     (C_out, 1)            conv bias, f32
    #   o_ref:     (C_out, B_blk*L_out)  lane-dense output slab
    cin, width = x_ref.shape

    # --- folded BatchNorm + ReLU: one FMA + max per element (f32 VPU) -------
    x = x_ref[...].astype(jnp.float32)
    y = jnp.maximum(x * scale_ref[...] + shift_ref[...], 0.0)

    # Per-lane position within its own batch element's (padded) sequence.
    if kernel_size > 1:
        pos = lax.broadcasted_iota(jnp.int32, (cin, width), 1) % l_eff

    # --- build the K im2col taps in registers (no VMEM scratch) -------------
    taps = []
    for k in range(kernel_size):               # static, tiny loop (K taps)
        delta = k - pad                        # tap offset relative to output
        if delta == 0:
            tap = y
        else:
            # Cyclic lane rotation on the XLU; tap[:, j] = y[:, j + delta].
            shifted = pltpu.roll(y, (-delta) % width, axis=1)
            # Zero out columns whose source position falls outside this batch
            # element's valid [0, seq_len) range (conv zero padding + packed
            # batch boundaries / wrap-around).
            valid = jnp.logical_and(pos + delta >= 0, pos + delta < seq_len)
            tap = jnp.where(valid, shifted, 0.0)
        if stride > 1:
            # De-interleave via reshape (cheap layout move, no strided lane
            # gather): keep phase 0 => source column o*stride per output o.
            tap = tap.reshape(cin, width // stride, stride)[:, :, 0]
        taps.append(tap.astype(mxu_dtype))

    slab = jnp.concatenate(taps, axis=0) if kernel_size > 1 else taps[0]

    # --- one deep MXU matmul, f32 accumulate, bias added exactly once -------
    acc = jnp.dot(w_ref[...], slab, preferred_element_type=jnp.float32)
    o_ref[...] = (acc + b_ref[...]).astype(o_ref.dtype)


def _pick_batch_block(n, out_len):
    """Choose B_blk (a divisor of n) so each grid step's lane width
    (B_blk * L_out) is a multiple of 128 (lane-dense stores, good MXU column
    occupancy), preferring >= 2 grid steps (v7x has 2 TensorCores) and
    >= 256 lanes (v6e/v7x MXU result width)."""
    divisors = [d for d in range(1, n + 1) if n % d == 0]
    aligned = [d for d in divisors if (d * out_len) % 128 == 0]
    for lane_target, min_steps in ((256, 2), (128, 2), (128, 1)):
        cand = [d for d in aligned
                if d * out_len >= lane_target and n // d >= min_steps]
        if cand:
            return min(cand)
    # Can't reach 128 lanes: use the whole batch (block == full array, legal).
    return n


def bn_relu_conv(x, gamma, beta, weight, bias, *, kernel_size, stride,
                 mxu_dtype=jnp.bfloat16):
    """x: (N, C_in, L) NCL like PyTorch. Returns (N, C_out, L_out).

    mxu_dtype: matmul input dtype (bf16 default; pass jnp.float32 for
    bit-tighter accuracy at lower MXU throughput). Accumulation is always f32.
    """
    n, cin, seq_len = x.shape
    cout = weight.shape[0]
    assert kernel_size % 2 == 1, "even kernel_size not supported"
    pad = kernel_size // 2
    out_len = (seq_len + 2 * pad - kernel_size) // stride + 1
    l_eff = out_len * stride               # per-batch packed length (>= L)

    # --- training-mode BatchNorm1d folded into per-channel scale/shift ------
    # Single pass over x (sum & sum of squares) => x read from HBM twice
    # total (stats + kernel), not three times.
    xf = x.astype(jnp.float32)
    cnt = n * seq_len
    s = jnp.sum(xf, axis=(0, 2))
    ss = jnp.sum(xf * xf, axis=(0, 2))
    mean = s / cnt
    var = jnp.maximum(ss / cnt - mean * mean, 0.0)   # biased var, like PyTorch
    scale_v = gamma.astype(jnp.float32) * lax.rsqrt(var + EPS)
    shift_v = beta.astype(jnp.float32) - mean * scale_v
    scale = scale_v.reshape(cin, 1)
    shift = shift_v.reshape(cin, 1)

    # --- pack batch along lanes: (N, C, L) -> (C_in, N*L_eff) ---------------
    xp = jnp.transpose(xf, (1, 0, 2))                # (C_in, N, L)
    if l_eff > seq_len:                              # only for stride > 1
        xp = jnp.pad(xp, ((0, 0), (0, 0), (0, l_eff - seq_len)))
    xp = xp.reshape(cin, n * l_eff)

    # im2col weight: (C_out, C_in, K) -> (C_out, K*C_in); column k*C_in + c
    # holds weight[:, c, k] (matches tap-k row block in the kernel's slab).
    w2 = jnp.transpose(weight, (0, 2, 1)).reshape(cout, kernel_size * cin)
    w2 = w2.astype(mxu_dtype)
    bias2 = bias.reshape(cout, 1).astype(jnp.float32)

    b_blk = _pick_batch_block(n, out_len)
    n_blocks = n // b_blk

    kern = functools.partial(
        _bn_relu_conv_kernel,
        kernel_size=kernel_size, stride=stride, pad=pad, seq_len=seq_len,
        l_eff=l_eff, out_len=out_len, mxu_dtype=mxu_dtype)

    grid_spec = pltpu.PrefetchScalarGridSpec(
        num_scalar_prefetch=0,
        grid=(n_blocks,),
        in_specs=[
            # Packed activations: one lane-dense batch block per grid step.
            pl.BlockSpec((cin, b_blk * l_eff), lambda i: (0, i)),
            # Grid-invariant parameters: constant index maps, so the Pallas
            # pipeline only issues their DMA on the first step (block index
            # never changes between iterations) — no per-step re-fetch.
            pl.BlockSpec((cin, 1), lambda i: (0, 0)),
            pl.BlockSpec((cin, 1), lambda i: (0, 0)),
            pl.BlockSpec((cout, kernel_size * cin), lambda i: (0, 0)),
            pl.BlockSpec((cout, 1), lambda i: (0, 0)),
        ],
        out_specs=pl.BlockSpec((cout, b_blk * out_len), lambda i: (0, i)),
    )

    out_packed = pl.pallas_call(
        kern,
        out_shape=jax.ShapeDtypeStruct((cout, n * out_len), x.dtype),
        grid_spec=grid_spec,
        compiler_params=pltpu.CompilerParams(
            dimension_semantics=("parallel",)),
    )(xp, scale, shift, w2, bias2)

    # Cheap wrapper un-pack back to PyTorch's NCL layout.
    return jnp.transpose(out_packed.reshape(cout, n, out_len), (1, 0, 2))


def _reference(x, gamma, beta, weight, bias, *, kernel_size, stride):
    """Pure-JAX reference matching PyTorch BNReLUConv forward (training mode)."""
    mean = jnp.mean(x, axis=(0, 2), keepdims=True)
    var = jnp.mean(jnp.square(x - mean), axis=(0, 2), keepdims=True)
    y = (x - mean) / jnp.sqrt(var + EPS) * gamma.reshape(1, -1, 1) \
        + beta.reshape(1, -1, 1)
    y = jnp.maximum(y, 0.0)
    pad = kernel_size // 2
    out = lax.conv_general_dilated(
        y, weight, window_strides=(stride,), padding=[(pad, pad)],
        dimension_numbers=('NCH', 'OIH', 'NCH'))
    return out + bias.reshape(1, -1, 1)


if __name__ == "__main__":
    # Module defaults: input_channels=128, out_channels=128; K=3, stride=1.
    # N*L_out = 256 total lanes -> two lane-dense (128-wide) parallel steps.
    N, CIN, COUT, L = 8, 128, 128, 32
    KSIZE, STRIDE = 3, 1

    key = jax.random.PRNGKey(0)
    kx, kg, kb, kw, kc = jax.random.split(key, 5)
    x = jax.random.normal(kx, (N, CIN, L), dtype=jnp.float32)
    gamma = 1.0 + 0.1 * jax.random.normal(kg, (CIN,), dtype=jnp.float32)
    beta = 0.1 * jax.random.normal(kb, (CIN,), dtype=jnp.float32)
    weight = 0.05 * jax.random.normal(kw, (COUT, CIN, KSIZE), dtype=jnp.float32)
    bias = 0.1 * jax.random.normal(kc, (COUT,), dtype=jnp.float32)

    out = bn_relu_conv(x, gamma, beta, weight, bias,
                       kernel_size=KSIZE, stride=STRIDE)
    out = jax.block_until_ready(out)

    ref = _reference(x, gamma, beta, weight, bias,
                     kernel_size=KSIZE, stride=STRIDE)
    assert out.shape == ref.shape, (out.shape, ref.shape)
    # bf16 MXU inputs (f32 accumulation) -> slightly looser tolerance than f32.
    assert jnp.allclose(out, ref, rtol=2e-2, atol=2e-2), \
        float(jnp.max(jnp.abs(out - ref)))

    print("KERNEL_OK")
</pallas_src>

<mosaic_0001>
module attributes {stable_mosaic.version = 11 : i64} {
  func.func @_bn_relu_conv_kernel(%arg0: i32, %arg1: memref<128x128xf32, #tpu.memory_space<vmem>>, %arg2: memref<128x1xf32, #tpu.memory_space<vmem>>, %arg3: memref<128x1xf32, #tpu.memory_space<vmem>>, %arg4: memref<128x384xbf16, #tpu.memory_space<vmem>>, %arg5: memref<128x1xf32, #tpu.memory_space<vmem>>, %arg6: memref<128x128xf32, #tpu.memory_space<vmem>>) attributes {dimension_semantics = [#tpu.dimension_semantics<parallel>], iteration_bounds = array<i64: 2>, scalar_prefetch = 0 : i64, scratch_operands = 0 : i64, tpu.core_type = #tpu.core_type<tc>, window_params = [{transform_indices = @transform_0, window_bounds = array<i64: 128, 128>}, {pipeline_mode = #tpu.pipeline_mode<synchronous>, transform_indices = @transform_1, window_bounds = array<i64: 128, 1>}, {pipeline_mode = #tpu.pipeline_mode<synchronous>, transform_indices = @transform_2, window_bounds = array<i64: 128, 1>}, {pipeline_mode = #tpu.pipeline_mode<synchronous>, transform_indices = @transform_3, window_bounds = array<i64: 128, 384>}, {pipeline_mode = #tpu.pipeline_mode<synchronous>, transform_indices = @transform_4, window_bounds = array<i64: 128, 1>}, {transform_indices = @transform_5, window_bounds = array<i64: 128, 128>}]} {
    %c0 = arith.constant 0 : index
    %c0_0 = arith.constant 0 : index
    %0 = vector.load %arg1[%c0, %c0_0] : memref<128x128xf32, #tpu.memory_space<vmem>>, vector<128x128xf32>
    %c0_1 = arith.constant 0 : index
    %c0_2 = arith.constant 0 : index
    %1 = vector.load %arg2[%c0_1, %c0_2] : memref<128x1xf32, #tpu.memory_space<vmem>>, vector<128x1xf32>
    %2 = vector.broadcast %1 : vector<128x1xf32> to vector<128x128xf32>
    %3 = arith.mulf %0, %2 : vector<128x128xf32>
    %c0_3 = arith.constant 0 : index
    %c0_4 = arith.constant 0 : index
    %4 = vector.load %arg3[%c0_3, %c0_4] : memref<128x1xf32, #tpu.memory_space<vmem>>, vector<128x1xf32>
    %5 = vector.broadcast %4 : vector<128x1xf32> to vector<128x128xf32>
    %6 = arith.addf %3, %5 : vector<128x128xf32>
    %cst = arith.constant 0.000000e+00 : f32
    %7 = vector.broadcast %cst : f32 to vector<128x128xf32>
    %8 = arith.maximumf %6, %7 : vector<128x128xf32>
    %9 = tpu.iota {dimensions = array<i32: 1>} : vector<128x128xi32>
    %c32_i32 = arith.constant 32 : i32
    %c0_i32 = arith.constant 0 : i32
    %10 = arith.cmpi eq, %c32_i32, %c0_i32 : i32
    %c1_i32 = arith.constant 1 : i32
    %11 = arith.select %10, %c1_i32, %c32_i32 : i32
    %12 = vector.broadcast %11 : i32 to vector<128x128xi32>
    %13 = arith.remsi %9, %12 : vector<128x128xi32>
    %c0_i32_5 = arith.constant 0 : i32
    %14 = vector.broadcast %c0_i32_5 : i32 to vector<128x128xi32>
    %15 = arith.cmpi ne, %13, %14 : vector<128x128xi32>
    %c0_i32_6 = arith.constant 0 : i32
    %16 = vector.broadcast %c0_i32_6 : i32 to vector<128x128xi32>
    %17 = arith.cmpi slt, %13, %16 : vector<128x128xi32>
    %c0_i32_7 = arith.constant 0 : i32
    %18 = arith.cmpi slt, %11, %c0_i32_7 : i32
    %19 = vector.broadcast %18 : i1 to vector<128x128xi1>
    %20 = vector.broadcast %19 : vector<128x128xi1> to vector<128x128xi1>
    %21 = arith.xori %17, %20 : vector<128x128xi1>
    %22 = arith.andi %21, %15 : vector<128x128xi1>
    %23 = vector.broadcast %11 : i32 to vector<128x128xi32>
    %24 = arith.addi %13, %23 : vector<128x128xi32>
    %25 = arith.select %22, %24, %13 : vector<128x128xi1>, vector<128x128xi32>
    %c1_i32_8 = arith.constant 1 : i32
    %26 = tpu.dynamic_rotate %8 by %c1_i32_8 dim 1 : vector<128x128xf32>, i32 -> vector<128x128xf32>
    %c-1_i32 = arith.constant -1 : i32
    %27 = vector.broadcast %c-1_i32 : i32 to vector<128x128xi32>
    %28 = arith.addi %25, %27 : vector<128x128xi32>
    %c0_i32_9 = arith.constant 0 : i32
    %29 = vector.broadcast %c0_i32_9 : i32 to vector<128x128xi32>
    %30 = arith.cmpi sge, %28, %29 : vector<128x128xi32>
    %c-1_i32_10 = arith.constant -1 : i32
    %31 = vector.broadcast %c-1_i32_10 : i32 to vector<128x128xi32>
    %32 = arith.addi %25, %31 : vector<128x128xi32>
    %c32_i32_11 = arith.constant 32 : i32
    %33 = vector.broadcast %c32_i32_11 : i32 to vector<128x128xi32>
    %34 = arith.cmpi slt, %32, %33 : vector<128x128xi32>
    %35 = arith.andi %30, %34 : vector<128x128xi1>
    %cst_12 = arith.constant 0.000000e+00 : f32
    %36 = vector.broadcast %cst_12 : f32 to vector<128x128xf32>
    %37 = arith.select %35, %26, %36 : vector<128x128xi1>, vector<128x128xf32>
    %38 = arith.truncf %37 : vector<128x128xf32> to vector<128x128xbf16>
    %39 = arith.truncf %8 : vector<128x128xf32> to vector<128x128xbf16>
    %c127_i32 = arith.constant 127 : i32
    %40 = tpu.dynamic_rotate %8 by %c127_i32 dim 1 : vector<128x128xf32>, i32 -> vector<128x128xf32>
    %c1_i32_13 = arith.constant 1 : i32
    %41 = vector.broadcast %c1_i32_13 : i32 to vector<128x128xi32>
    %42 = arith.addi %25, %41 : vector<128x128xi32>
    %c0_i32_14 = arith.constant 0 : i32
    %43 = vector.broadcast %c0_i32_14 : i32 to vector<128x128xi32>
    %44 = arith.cmpi sge, %42, %43 : vector<128x128xi32>
    %c1_i32_15 = arith.constant 1 : i32
    %45 = vector.broadcast %c1_i32_15 : i32 to vector<128x128xi32>
    %46 = arith.addi %25, %45 : vector<128x128xi32>
    %c32_i32_16 = arith.constant 32 : i32
    %47 = vector.broadcast %c32_i32_16 : i32 to vector<128x128xi32>
    %48 = arith.cmpi slt, %46, %47 : vector<128x128xi32>
    %49 = arith.andi %44, %48 : vector<128x128xi1>
    %cst_17 = arith.constant 0.000000e+00 : f32
    %50 = vector.broadcast %cst_17 : f32 to vector<128x128xf32>
    %51 = arith.select %49, %40, %50 : vector<128x128xi1>, vector<128x128xf32>
    %52 = arith.truncf %51 : vector<128x128xf32> to vector<128x128xbf16>
    %53 = tpu.concatenate %38, %39, %52 in 0 : vector<128x128xbf16>, vector<128x128xbf16>, vector<128x128xbf16> -> vector<384x128xbf16>
    %c0_18 = arith.constant 0 : index
    %c0_19 = arith.constant 0 : index
    %54 = vector.load %arg4[%c0_18, %c0_19] : memref<128x384xbf16, #tpu.memory_space<vmem>>, vector<128x384xbf16>
    %cst_20 = arith.constant dense<0.000000e+00> : vector<128x128xf32>
    %55 = tpu.matmul %54, %53, %cst_20 {dimension_numbers = #tpu.dot_dimension_numbers<[1], [0], [0], [1], [0, 0, 1, 1], [], []>} : vector<128x384xbf16>, vector<384x128xbf16>, vector<128x128xf32> -> vector<128x128xf32>
    %c0_21 = arith.constant 0 : index
    %c0_22 = arith.constant 0 : index
    %56 = vector.load %arg5[%c0_21, %c0_22] : memref<128x1xf32, #tpu.memory_space<vmem>>, vector<128x1xf32>
    %57 = vector.broadcast %56 : vector<128x1xf32> to vector<128x128xf32>
    %58 = arith.addf %55, %57 : vector<128x128xf32>
    %c0_23 = arith.constant 0 : index
    %c0_24 = arith.constant 0 : index
    %59 = vector.load %arg6[%c0_23, %c0_24] : memref<128x128xf32, #tpu.memory_space<vmem>>, vector<128x128xf32>
    tpu.vector_store %arg6[%c0_23, %c0_24], %58 {strides = array<i32>} : memref<128x128xf32, #tpu.memory_space<vmem>>, vector<128x128xf32>,
    return
  }
  func.func @transform_0(%arg0: i32) -> (i32, i32) {
    %c0_i32 = arith.constant 0 : i32
    %c0_i32_0 = arith.constant 0 : i32
    return %c0_i32, %arg0 : i32, i32
  }
  func.func @transform_1(%arg0: i32) -> (i32, i32) {
    %c0_i32 = arith.constant 0 : i32
    %c0_i32_0 = arith.constant 0 : i32
    %c0_i32_1 = arith.constant 0 : i32
    return %c0_i32, %c0_i32_0 : i32, i32
  }
  func.func @transform_2(%arg0: i32) -> (i32, i32) {
    %c0_i32 = arith.constant 0 : i32
    %c0_i32_0 = arith.constant 0 : i32
    %c0_i32_1 = arith.constant 0 : i32
    return %c0_i32, %c0_i32_0 : i32, i32
  }
  func.func @transform_3(%arg0: i32) -> (i32, i32) {
    %c0_i32 = arith.constant 0 : i32
    %c0_i32_0 = arith.constant 0 : i32
    %c0_i32_1 = arith.constant 0 : i32
    return %c0_i32, %c0_i32_0 : i32, i32
  }
  func.func @transform_4(%arg0: i32) -> (i32, i32) {
    %c0_i32 = arith.constant 0 : i32
    %c0_i32_0 = arith.constant 0 : i32
    %c0_i32_1 = arith.constant 0 : i32
    return %c0_i32, %c0_i32_0 : i32, i32
  }
  func.func @transform_5(%arg0: i32) -> (i32, i32) {
    %c0_i32 = arith.constant 0 : i32
    %c0_i32_0 = arith.constant 0 : i32
    return %c0_i32, %arg0 : i32, i32
  }
}

</mosaic_0001>

<llo_original>
// kernel: tpu_custom_call.1
$region0: #{tpu_custom_call.1}
  #allocation0 [shape = 'u32[]', space=smem, size = 0x4, offset = 0x4, fixed_abs, tag = 'smem constant byte address 0x4 - core index']
  #allocation1 [shape = 'u32[72,128]{1,0:T(1,128)}', space=vmem, size = 0x9000, scoped, tag = 'internal scratch']
  %s0 = inlined_call_operand.vmem [shape: f32[128,256], index: 0, kind: input, shape index: {}]
  %s1 = inlined_call_operand.vmem [shape: f32[128,1], index: 1, kind: input, shape index: {}]
  %s2 = inlined_call_operand.vmem [shape: f32[128,1], index: 2, kind: input, shape index: {}]
  %s3 = inlined_call_operand.hbm [shape: bf16[128,384], index: 3, kind: input, shape index: {}]
  %s4 = inlined_call_operand.vmem [shape: f32[128,1], index: 4, kind: input, shape index: {}]
  %s5 = inlined_call_operand.hbm [shape: f32[128,256], index: 5, kind: output, shape index: {}]
  %s6 = sld [smem:[#allocation0]]
  $region95: #{tpu_custom_call.1} parent=0
    _
  %s8 = ssub.s32 1, %s6
  %s9 = scalar_select 0, %s8, %s6
  $region1: #{tpu_custom_call.1} parent=0
    #allocation2 [shape = 'u8[131072]{0}', space=vmem, size = 0x20000, scoped, tag = 'input window, operand 0']
    #allocation3 [shape = 'u8[98304]{0}', space=vmem, size = 0x18000, scoped, tag = 'input window, operand 3, single buffered']
    #allocation4 [shape = 's32[2]{0}', space=sflag, size = 0x8, scoped, tag = 'scoped memory for tpu_custom_call.1']
    #allocation5 [shape = 's32[2]{0}', space=sflag, size = 0x8, scoped, tag = 'scoped memory for tpu_custom_call.1']
    #allocation6 [shape = 'u8[131072]{0}', space=vmem, size = 0x20000, scoped, tag = 'output window, operand 0']
    %10 = vsyncpa [#allocation4], 0
    %11 = vsyncpa [#allocation5], 0
    %s12 = scalar_lea.sflag [#allocation5], 1
    %13 = vsyncpa %s12, 0
    loop: start=0, step=1, limit=4
    $region2: #{tpu_custom_call.1} parent=1 // loop_pre_header
      _
    $region3: #{tpu_custom_call.1} parent=1 // loop_header
      %s15 = sphi 0, %s19
      %p16 = scmp.ge.s32.totalorder %s15, 4
      %s25 = sphi 0, %s27
      %s28 = sphi 0, %s25
      %s29 = sphi 0, %s28
      %s45 = sphi 0, %s29
      %s49 = sphi 0, %s49
      %s51 = sphi 0, %s49
      %s52 = sphi 0, %s51
      %s66 = sphi 0, %s52
      %s70 = sphi 0, %s70
      %s72 = sphi 0, %s70
      %s73 = sphi 0, %s72
      %s87 = sphi 0, %s73
      %s91 = sphi 0, %s91
      %s93 = sphi 0, %s91
      %s94 = sphi 0, %s93
      %s108 = sphi 0, %s94
      %s112 = sphi 0, %s112
      %s114 = sphi 0, %s112
      %s115 = sphi 0, %s114
      %s129 = sphi 0, %s115
      %s135 = sphi 0, %s137
      %s138 = sphi 0, %s135
      %s139 = sphi 0, %s138
      %s155 = sphi 0, %s139
    $region4: #{tpu_custom_call.1} parent=1 // loop_header_branch
      %18 = sbr.rel (%p16) target = $region8
    $region5: #{tpu_custom_call.1} parent=1 // loop_body
      %s20 = ssub.s32 %s15, 1
      %s21 = ssub.s32 %s15, 2
      %s22 = sadd.s32 %s15, 1
      %s23 = ssub.s32 %s15, %s22
      %p24 = scmp.eq.s32.totalorder %s23, 0
      %s26 = sadd.s32 %s25, 1
      %s27 = scalar_select %p24, %s25, %s26
      %p30 = pneg %p24
      %p31 = scmp.eq.s32.totalorder %s15, 1
      %p32 = por %p30, %p31
      %p33 = scmp.ne.s32.totalorder %s25, %s28
      %p34 = scmp.eq.s32.totalorder %s15, 0
      %p35 = por %p33, %p34
      %p36 = scmp.ne.s32.totalorder %s25, %s28
      %p37 = scmp.eq.s32.totalorder %s20, 1
      %p38 = por %p36, %p37
      %p39 = scmp.ne.s32.totalorder %s28, %s29
      %p40 = scmp.eq.s32.totalorder %s20, 0
      %p41 = por %p39, %p40
      %p42 = scmp.ne.s32.totalorder %s28, %s29
      %p43 = scmp.eq.s32.totalorder %s21, 1
      %p44 = por %p42, %p43
      %p46 = scmp.ne.s32.totalorder %s29, %s45
      %p47 = scmp.eq.s32.totalorder %s21, 0
      %p48 = por %p46, %p47
      %s50 = sadd.s32 %s49, 1
      %p53 = scmp.eq.s32.totalorder %s15, 1
      %p54 = scmp.ne.s32.totalorder %s49, %s51
      %p55 = scmp.eq.s32.totalorder %s15, 0
      %p56 = por %p54, %p55
      %p57 = scmp.ne.s32.totalorder %s49, %s51
      %p58 = scmp.eq.s32.totalorder %s20, 1
      %p59 = por %p57, %p58
      %p60 = scmp.ne.s32.totalorder %s51, %s52
      %p61 = scmp.eq.s32.totalorder %s20, 0
      %p62 = por %p60, %p61
      %p63 = scmp.ne.s32.totalorder %s51, %s52
      %p64 = scmp.eq.s32.totalorder %s21, 1
      %p65 = por %p63, %p64
      %p67 = scmp.ne.s32.totalorder %s52, %s66
      %p68 = scmp.eq.s32.totalorder %s21, 0
      %p69 = por %p67, %p68
      %s71 = sadd.s32 %s70, 1
      %p74 = scmp.eq.s32.totalorder %s15, 1
      %p75 = scmp.ne.s32.totalorder %s70, %s72
      %p76 = scmp.eq.s32.totalorder %s15, 0
      %p77 = por %p75, %p76
      %p78 = scmp.ne.s32.totalorder %s70, %s72
      %p79 = scmp.eq.s32.totalorder %s20, 1
      %p80 = por %p78, %p79
      %p81 = scmp.ne.s32.totalorder %s72, %s73
      %p82 = scmp.eq.s32.totalorder %s20, 0
      %p83 = por %p81, %p82
      %p84 = scmp.ne.s32.totalorder %s72, %s73
      %p85 = scmp.eq.s32.totalorder %s21, 1
      %p86 = por %p84, %p85
      %p88 = scmp.ne.s32.totalorder %s73, %s87
      %p89 = scmp.eq.s32.totalorder %s21, 0
      %p90 = por %p88, %p89
      %s92 = sadd.s32 %s91, 1
      %p95 = scmp.eq.s32.totalorder %s15, 1
      %p96 = scmp.ne.s32.totalorder %s91, %s93
      %p97 = scmp.eq.s32.totalorder %s15, 0
      %p98 = por %p96, %p97
      %p99 = scmp.ne.s32.totalorder %s91, %s93
      %p100 = scmp.eq.s32.totalorder %s20, 1
      %p101 = por %p99, %p100
      %p102 = scmp.ne.s32.totalorder %s93, %s94
      %p103 = scmp.eq.s32.totalorder %s20, 0
      %p104 = por %p102, %p103
      %p105 = scmp.ne.s32.totalorder %s93, %s94
      %p106 = scmp.eq.s32.totalorder %s21, 1
      %p107 = por %p105, %p106
      %p109 = scmp.ne.s32.totalorder %s94, %s108
      %p110 = scmp.eq.s32.totalorder %s21, 0
      %p111 = por %p109, %p110
      %s113 = sadd.s32 %s112, 1
      %p116 = scmp.eq.s32.totalorder %s15, 1
      %p117 = scmp.ne.s32.totalorder %s112, %s114
      %p118 = scmp.eq.s32.totalorder %s15, 0
      %p119 = por %p117, %p118
      %p120 = scmp.ne.s32.totalorder %s112, %s114
      %p121 = scmp.eq.s32.totalorder %s20, 1
      %p122 = por %p120, %p121
      %p123 = scmp.ne.s32.totalorder %s114, %s115
      %p124 = scmp.eq.s32.totalorder %s20, 0
      %p125 = por %p123, %p124
      %p126 = scmp.ne.s32.totalorder %s114, %s115
      %p127 = scmp.eq.s32.totalorder %s21, 1
      %p128 = por %p126, %p127
      %p130 = scmp.ne.s32.totalorder %s115, %s129
      %p131 = scmp.eq.s32.totalorder %s21, 0
      %p132 = por %p130, %p131
      %s133 = ssub.s32 %s15, %s22
      %p134 = scmp.eq.s32.totalorder %s133, 0
      %s136 = sadd.s32 %s135, 1
      %s137 = scalar_select %p134, %s135, %s136
      %p140 = pneg %p134
      %p141 = scmp.eq.s32.totalorder %s15, 1
      %p142 = por %p140, %p141
      %p143 = scmp.ne.s32.totalorder %s135, %s138
      %p144 = scmp.eq.s32.totalorder %s15, 0
      %p145 = por %p143, %p144
      %p146 = scmp.ne.s32.totalorder %s135, %s138
      %p147 = scmp.eq.s32.totalorder %s20, 1
      %p148 = por %p146, %p147
      %p149 = scmp.ne.s32.totalorder %s138, %s139
      %p150 = scmp.eq.s32.totalorder %s20, 0
      %p151 = por %p149, %p150
      %p152 = scmp.ne.s32.totalorder %s138, %s139
      %p153 = scmp.eq.s32.totalorder %s21, 1
      %p154 = por %p152, %p153
      %p156 = scmp.ne.s32.totalorder %s139, %s155
      %p157 = scmp.eq.s32.totalorder %s21, 0
      %p158 = por %p156, %p157
      %p159 = scmp.le.s32.totalorder 1, %s15
      %p160 = scmp.lt.s32.totalorder %s15, 3
      %p161 = pnand %p159, %p160
      %p162 = pneg %p161
      // Predicated region
      $region9: #{tpu_custom_call.1} parent=5 // pred_check
        _
      $region10: #{tpu_custom_call.1} parent=5 // pred_check_branch
        %164 = sbr.rel (%p161) target = $region12
      $region11: #{tpu_custom_call.1} parent=5 // pred_region
        %s165 = ssub.s32 %s15, 1
        // Predicated region
        $region13: #{tpu_custom_call.1} parent=11 // pred_check
          %p166 = pneg %p62
        $region14: #{tpu_custom_call.1} parent=11 // pred_check_branch
          %168 = sbr.rel (%p166) target = $region16
        $region15: #{tpu_custom_call.1} parent=11 // pred_region
          _
        $region16: #{tpu_custom_call.1} parent=11 // pred_fallthru
          _
        // Predicated region
        $region17: #{tpu_custom_call.1} parent=11 // pred_check
          %p169 = pneg %p83
        $region18: #{tpu_custom_call.1} parent=11 // pred_check_branch
          %171 = sbr.rel (%p169) target = $region20
        $region19: #{tpu_custom_call.1} parent=11 // pred_region
          _
        $region20: #{tpu_custom_call.1} parent=11 // pred_fallthru
          _
        // Predicated region
        $region21: #{tpu_custom_call.1} parent=11 // pred_check
          %p172 = pneg %p104
        $region22: #{tpu_custom_call.1} parent=11 // pred_check_branch
          %174 = sbr.rel (%p172) target = $region24
        $region23: #{tpu_custom_call.1} parent=11 // pred_region
          %176 = vsyncadd [#allocation4], 0
          %s177 = sshll.u32 %s3, 4
          %s178 = int_to_ptr.hbm [resolvable:$true] %s177
          %s179 = sshll.u32 [#allocation3], 4
          %s180 = int_to_ptr.vmem [resolvable:$true] %s179
          %185 = dma.hbm_to_vmem [thread:$0]  %s178, 3072, %s180, [#allocation4], 192, 192, 12
        $region24: #{tpu_custom_call.1} parent=11 // pred_fallthru
          _
        // Predicated region
        $region25: #{tpu_custom_call.1} parent=11 // pred_check
          %p186 = pneg %p125
        $region26: #{tpu_custom_call.1} parent=11 // pred_check_branch
          %188 = sbr.rel (%p186) target = $region28
        $region27: #{tpu_custom_call.1} parent=11 // pred_region
          _
        $region28: #{tpu_custom_call.1} parent=11 // pred_fallthru
          _
      $region12: #{tpu_custom_call.1} parent=5 // pred_fallthru
        _
      %p189 = scmp.lt.s32.totalorder %s15, 2
      // Predicated region
      $region29: #{tpu_custom_call.1} parent=5 // pred_check
        %p190 = pneg %p189
      $region30: #{tpu_custom_call.1} parent=5 // pred_check_branch
        %192 = sbr.rel (%p190) target = $region32
      $region31: #{tpu_custom_call.1} parent=5 // pred_region
        // Predicated region
        $region33: #{tpu_custom_call.1} parent=31 // pred_check
          %p193 = pneg %p35
        $region34: #{tpu_custom_call.1} parent=31 // pred_check_branch
          %195 = sbr.rel (%p193) target = $region36
        $region35: #{tpu_custom_call.1} parent=31 // pred_region
          %s196 = sand.u32 %s25, 1
          %s197 = sand.u32 %s25, 1
          %s198 = smul.addr %s197, 128
          %s199 = scalar_lea.vmem [#allocation2], %s198
          %s200 = smul.addr %s15, 8
          %s201 = scalar_lea.vmem %s0, %s200
          // Predicated region
          $region37: #{tpu_custom_call.1} parent=35 // pred_check
            _
          $region38: #{tpu_custom_call.1} parent=35 // pred_check_branch
            %203 = sbr.rel (0) target = $region40
          $region39: #{tpu_custom_call.1} parent=35 // pred_region
            // Predicated region
            $region41: #{tpu_custom_call.1} parent=39 // pred_check
              _
            $region42: #{tpu_custom_call.1} parent=39 // pred_check_branch
              %205 = sbr.rel (0) target = $region44
            $region43: #{tpu_custom_call.1} parent=39 // pred_region
              // Predicated region
              $region56: #{tpu_custom_call.1} parent=43 // pred_check
                _
              $region57: #{tpu_custom_call.1} parent=43 // pred_check_branch
                %251 = sbr.rel (0) target = $region59
              $region58: #{tpu_custom_call.1} parent=43 // pred_region
                loop: start=0, step=1, limit=1
                $region60: #{tpu_custom_call.1} parent=58 // loop_pre_header
                  _
                $region61: #{tpu_custom_call.1} parent=58 // loop_header
                  %s253 = sphi 0, %s257
                  %p254 = scmp.ge.s32.totalorder %s253, 1
                  %s258 = sphi %s201, %s201
                  %s259 = sphi %s199, %s199
                $region62: #{tpu_custom_call.1} parent=58 // loop_header_branch
                  %256 = sbr.rel (%p254) target = $region66
                $region63: #{tpu_custom_call.1} parent=58 // loop_body
                  %v260 = vld [vmem:[%s258] sm:$0xff]
                  %261 = vst [vmem:[%s259] sm:$0xff] %v260
                  %v262 = vld [vmem:[%s258 + $0x10] sm:$0xff]
                  %263 = vst [vmem:[%s259 + $0x8] sm:$0xff] %v262
                  %v264 = vld [vmem:[%s258 + $0x20] sm:$0xff]
                  %265 = vst [vmem:[%s259 + $0x10] sm:$0xff] %v264
                  %v266 = vld [vmem:[%s258 + $0x30] sm:$0xff]
                  %267 = vst [vmem:[%s259 + $0x18] sm:$0xff] %v266
                  %v268 = vld [vmem:[%s258 + $0x40] sm:$0xff]
                  %269 = vst [vmem:[%s259 + $0x20] sm:$0xff] %v268
                  %v270 = vld [vmem:[%s258 + $0x50] sm:$0xff]
                  %271 = vst [vmem:[%s259 + $0x28] sm:$0xff] %v270
                  %v272 = vld [vmem:[%s258 + $0x60] sm:$0xff]
                  %273 = vst [vmem:[%s259 + $0x30] sm:$0xff] %v272
                  %v274 = vld [vmem:[%s258 + $0x70] sm:$0xff]
                  %275 = vst [vmem:[%s259 + $0x38] sm:$0xff] %v274
                  %v276 = vld [vmem:[%s258 + $0x80] sm:$0xff]
                  %277 = vst [vmem:[%s259 + $0x40] sm:$0xff] %v276
                  %v278 = vld [vmem:[%s258 + $0x90] sm:$0xff]
                  %279 = vst [vmem:[%s259 + $0x48] sm:$0xff] %v278
                  %v280 = vld [vmem:[%s258 + $0xa0] sm:$0xff]
                  %281 = vst [vmem:[%s259 + $0x50] sm:$0xff] %v280
                  %v282 = vld [vmem:[%s258 + $0xb0] sm:$0xff]
                  %283 = vst [vmem:[%s259 + $0x58] sm:$0xff] %v282
                  %v284 = vld [vmem:[%s258 + $0xc0] sm:$0xff]
                  %285 = vst [vmem:[%s259 + $0x60] sm:$0xff] %v284
                  %v286 = vld [vmem:[%s258 + $0xd0] sm:$0xff]
                  %287 = vst [vmem:[%s259 + $0x68] sm:$0xff] %v286
                  %v288 = vld [vmem:[%s258 + $0xe0] sm:$0xff]
                  %289 = vst [vmem:[%s259 + $0x70] sm:$0xff] %v288
                  %v290 = vld [vmem:[%s258 + $0xf0] sm:$0xff]
                  %291 = vst [vmem:[%s259 + $0x78] sm:$0xff] %v290
                $region64: #{tpu_custom_call.1} parent=58 // loop_footer
                  %s257 = sadd.s32 1, %s253
                $region65: #{tpu_custom_call.1} parent=58 // loop_footer_branch
                  %252 = sbr.rel target = $region61
                $region66: #{tpu_custom_call.1} parent=58 // loop_exit
                  _
              $region59: #{tpu_custom_call.1} parent=43 // pred_fallthru
                _
              // Predicated region
              $region67: #{tpu_custom_call.1} parent=43 // pred_check
                _
              $region68: #{tpu_custom_call.1} parent=43 // pred_check_branch
                %293 = sbr.rel target = $region70
              $region69: #{tpu_custom_call.1} parent=43 // pred_region
                _
              $region70: #{tpu_custom_call.1} parent=43 // pred_fallthru
                _
            $region44: #{tpu_custom_call.1} parent=39 // pred_fallthru
              _
            // Predicated region
            $region45: #{tpu_custom_call.1} parent=39 // pred_check
              _
            $region46: #{tpu_custom_call.1} parent=39 // pred_check_branch
              %207 = sbr.rel target = $region48
            $region47: #{tpu_custom_call.1} parent=39 // pred_region
              %s209 = ssub.s32 256, 1
              loop: start=0, step=1, limit=1
              $region49: #{tpu_custom_call.1} parent=47 // loop_pre_header
                _
              $region50: #{tpu_custom_call.1} parent=47 // loop_header
                %s211 = sphi 0, %s215
                %p212 = scmp.ge.s32.totalorder %s211, 1
                %s216 = sphi %s201, %s201
                %s217 = sphi %s199, %s199
              $region51: #{tpu_custom_call.1} parent=47 // loop_header_branch
                %214 = sbr.rel (%p212) target = $region55
              $region52: #{tpu_custom_call.1} parent=47 // loop_body
                %v218 = vld [vmem:[%s216] sm:%s209]
                %219 = vst [vmem:[%s217] sm:%s209] %v218
                %v220 = vld [vmem:[%s216 + $0x10] sm:%s209]
                %221 = vst [vmem:[%s217 + $0x8] sm:%s209] %v220
                %v222 = vld [vmem:[%s216 + $0x20] sm:%s209]
                %223 = vst [vmem:[%s217 + $0x10] sm:%s209] %v222
                %v224 = vld [vmem:[%s216 + $0x30] sm:%s209]
                %225 = vst [vmem:[%s217 + $0x18] sm:%s209] %v224
                %v226 = vld [vmem:[%s216 + $0x40] sm:%s209]
                %227 = vst [vmem:[%s217 + $0x20] sm:%s209] %v226
                %v228 = vld [vmem:[%s216 + $0x50] sm:%s209]
                %229 = vst [vmem:[%s217 + $0x28] sm:%s209] %v228
                %v230 = vld [vmem:[%s216 + $0x60] sm:%s209]
                %231 = vst [vmem:[%s217 + $0x30] sm:%s209] %v230
                %v232 = vld [vmem:[%s216 + $0x70] sm:%s209]
                %233 = vst [vmem:[%s217 + $0x38] sm:%s209] %v232
                %v234 = vld [vmem:[%s216 + $0x80] sm:%s209]
                %235 = vst [vmem:[%s217 + $0x40] sm:%s209] %v234
                %v236 = vld [vmem:[%s216 + $0x90] sm:%s209]
                %237 = vst [vmem:[%s217 + $0x48] sm:%s209] %v236
                %v238 = vld [vmem:[%s216 + $0xa0] sm:%s209]
                %239 = vst [vmem:[%s217 + $0x50] sm:%s209] %v238
                %v240 = vld [vmem:[%s216 + $0xb0] sm:%s209]
                %241 = vst [vmem:[%s217 + $0x58] sm:%s209] %v240
                %v242 = vld [vmem:[%s216 + $0xc0] sm:%s209]
                %243 = vst [vmem:[%s217 + $0x60] sm:%s209] %v242
                %v244 = vld [vmem:[%s216 + $0xd0] sm:%s209]
                %245 = vst [vmem:[%s217 + $0x68] sm:%s209] %v244
                %v246 = vld [vmem:[%s216 + $0xe0] sm:%s209]
                %247 = vst [vmem:[%s217 + $0x70] sm:%s209] %v246
                %v248 = vld [vmem:[%s216 + $0xf0] sm:%s209]
                %249 = vst [vmem:[%s217 + $0x78] sm:%s209] %v248
              $region53: #{tpu_custom_call.1} parent=47 // loop_footer
                %s215 = sadd.s32 1, %s211
              $region54: #{tpu_custom_call.1} parent=47 // loop_footer_branch
                %210 = sbr.rel target = $region50
              $region55: #{tpu_custom_call.1} parent=47 // loop_exit
                _
            $region48: #{tpu_custom_call.1} parent=39 // pred_fallthru
              _
          $region40: #{tpu_custom_call.1} parent=35 // pred_fallthru
            _
          %294 = vnop
        $region36: #{tpu_custom_call.1} parent=31 // pred_fallthru
          _
      $region32: #{tpu_custom_call.1} parent=5 // pred_fallthru
        _
      %p295 = scmp.le.s32.totalorder 1, %s15
      %p296 = scmp.lt.s32.totalorder %s15, 3
      %p297 = pnand %p295, %p296
      %p298 = pneg %p297
      // Predicated region
      $region71: #{tpu_custom_call.1} parent=5 // pred_check
        _
      $region72: #{tpu_custom_call.1} parent=5 // pred_check_branch
        %300 = sbr.rel (%p297) target = $region74
      $region73: #{tpu_custom_call.1} parent=5 // pred_region
        %s301 = ssub.s32 %s15, 1
        %s302 = sand.u32 %s28, 1
        %s303 = sand.u32 %s28, 1
        %s304 = smul.addr %s303, 128
        %s305 = scalar_lea.vmem [#allocation2], %s304
        // Predicated region
        $region75: #{tpu_custom_call.1} parent=73 // pred_check
          %p306 = pneg %p41
        $region76: #{tpu_custom_call.1} parent=73 // pred_check_branch
          %308 = sbr.rel (%p306) target = $region78
        $region77: #{tpu_custom_call.1} parent=73 // pred_region
          _
        $region78: #{tpu_custom_call.1} parent=73 // pred_fallthru
          _
        // Predicated region
        $region79: #{tpu_custom_call.1} parent=73 // pred_check
          %p309 = pneg %p104
        $region80: #{tpu_custom_call.1} parent=73 // pred_check_branch
          %311 = sbr.rel (%p309) target = $region82
        $region81: #{tpu_custom_call.1} parent=73 // pred_region
          %313 = dma.done [#allocation4], 3072
        $region82: #{tpu_custom_call.1} parent=73 // pred_fallthru
          _
        %s314 = sand.u32 %s28, 1
        %s315 = sand.u32 %s28, 1
        %s316 = smul.addr %s315, 128
        %s317 = scalar_lea.vmem [#allocation2], %s316
        %p318 = pneg %p41
        %p319 = pneg %p38
        %p320 = pneg %p62
        %p321 = pneg %p59
        %p322 = pneg %p83
        %p323 = pneg %p80
        %p324 = pneg %p104
        %p325 = pneg %p101
        %p326 = pneg %p125
        %p327 = pneg %p122
        %p328 = pneg %p151
        %p329 = pneg %p148
        %s330 = sand.u32 %s138, 1
        %s331 = scalar_lea.sflag [#allocation5], %s330
        %s332 = sand.u32 %s138, 1
        %s333 = smul.addr %s332, 128
        %s334 = scalar_lea.vmem [#allocation6], %s333
        %v335 = vld [vmem:[%s305] sm:$0xff]
        %v336 = vld [vmem:[%s305 + $0x8] sm:$0xff]
        %v337 = vld [vmem:[%s305 + $0x10] sm:$0xff]
        %v338 = vld [vmem:[%s305 + $0x18] sm:$0xff]
        %v339 = vld [vmem:[%s305 + $0x20] sm:$0xff]
        %v340 = vld [vmem:[%s305 + $0x28] sm:$0xff]
        %v341 = vld [vmem:[%s305 + $0x30] sm:$0xff]
        %v342 = vld [vmem:[%s305 + $0x38] sm:$0xff]
        %v343 = vld [vmem:[%s305 + $0x40] sm:$0xff]
        %v344 = vld [vmem:[%s305 + $0x48] sm:$0xff]
        %v345 = vld [vmem:[%s305 + $0x50] sm:$0xff]
        %v346 = vld [vmem:[%s305 + $0x58] sm:$0xff]
        %v347 = vld [vmem:[%s305 + $0x60] sm:$0xff]
        %v348 = vld [vmem:[%s305 + $0x68] sm:$0xff]
        %v349 = vld [vmem:[%s305 + $0x70] sm:$0xff]
        %v350 = vld [vmem:[%s305 + $0x78] sm:$0xff]
        %v351 = vld [vmem:[%s1] sm:$0xff]
        %v352 = vld [vmem:[%s1 + $0x8] sm:$0xff]
        %v353 = vld [vmem:[%s1 + $0x10] sm:$0xff]
        %v354 = vld [vmem:[%s1 + $0x18] sm:$0xff]
        %v355 = vld [vmem:[%s1 + $0x20] sm:$0xff]
        %v356 = vld [vmem:[%s1 + $0x28] sm:$0xff]
        %v357 = vld [vmem:[%s1 + $0x30] sm:$0xff]
        %v358 = vld [vmem:[%s1 + $0x38] sm:$0xff]
        %v359 = vld [vmem:[%s1 + $0x40] sm:$0xff]
        %v360 = vld [vmem:[%s1 + $0x48] sm:$0xff]
        %v361 = vld [vmem:[%s1 + $0x50] sm:$0xff]
        %v362 = vld [vmem:[%s1 + $0x58] sm:$0xff]
        %v363 = vld [vmem:[%s1 + $0x60] sm:$0xff]
        %v364 = vld [vmem:[%s1 + $0x68] sm:$0xff]
        %v365 = vld [vmem:[%s1 + $0x70] sm:$0xff]
        %v366 = vld [vmem:[%s1 + $0x78] sm:$0xff]
        %368 = vset.pattern.permute.xlu0 0
        %369 = vperm.xlu0 %368, %v351
        %v370 = vpop.permute.xlu0 %369
        %373 = vset.pattern.permute.xlu0 0
        %374 = vperm.xlu0 %373, %v352
        %v375 = vpop.permute.xlu0 %374
        %378 = vset.pattern.permute.xlu0 0
        %379 = vperm.xlu0 %378, %v353
        %v380 = vpop.permute.xlu0 %379
        %383 = vset.pattern.permute.xlu0 0
        %384 = vperm.xlu0 %383, %v354
        %v385 = vpop.permute.xlu0 %384
        %388 = vset.pattern.permute.xlu0 0
        %389 = vperm.xlu0 %388, %v355
        %v390 = vpop.permute.xlu0 %389
        %393 = vset.pattern.permute.xlu0 0
        %394 = vperm.xlu0 %393, %v356
        %v395 = vpop.permute.xlu0 %394
        %398 = vset.pattern.permute.xlu0 0
        %399 = vperm.xlu0 %398, %v357
        %v400 = vpop.permute.xlu0 %399
        %403 = vset.pattern.permute.xlu0 0
        %404 = vperm.xlu0 %403, %v358
        %v405 = vpop.permute.xlu0 %404
        %408 = vset.pattern.permute.xlu0 0
        %409 = vperm.xlu0 %408, %v359
        %v410 = vpop.permute.xlu0 %409
        %413 = vset.pattern.permute.xlu0 0
        %414 = vperm.xlu0 %413, %v360
        %v415 = vpop.permute.xlu0 %414
        %418 = vset.pattern.permute.xlu0 0
        %419 = vperm.xlu0 %418, %v361
        %v420 = vpop.permute.xlu0 %419
        %423 = vset.pattern.permute.xlu0 0
        %424 = vperm.xlu0 %423, %v362
        %v425 = vpop.permute.xlu0 %424
        %428 = vset.pattern.permute.xlu0 0
        %429 = vperm.xlu0 %428, %v363
        %v430 = vpop.permute.xlu0 %429
        %433 = vset.pattern.permute.xlu0 0
        %434 = vperm.xlu0 %433, %v364
        %v435 = vpop.permute.xlu0 %434
        %438 = vset.pattern.permute.xlu0 0
        %439 = vperm.xlu0 %438, %v365
        %v440 = vpop.permute.xlu0 %439
        %443 = vset.pattern.permute.xlu0 0
        %444 = vperm.xlu0 %443, %v366
        %v445 = vpop.permute.xlu0 %444
        %v447 = vmul.f32 %v335, %v370
        %v448 = vmul.f32 %v336, %v375
        %v449 = vmul.f32 %v337, %v380
        %v450 = vmul.f32 %v338, %v385
        %v451 = vmul.f32 %v339, %v390
        %v452 = vmul.f32 %v340, %v395
        %v453 = vmul.f32 %v341, %v400
        %v454 = vmul.f32 %v342, %v405
        %v455 = vmul.f32 %v343, %v410
        %v456 = vmul.f32 %v344, %v415
        %v457 = vmul.f32 %v345, %v420
        %v458 = vmul.f32 %v346, %v425
        %v459 = vmul.f32 %v347, %v430
        %v460 = vmul.f32 %v348, %v435
        %v461 = vmul.f32 %v349, %v440
        %v462 = vmul.f32 %v350, %v445
        %v463 = vld [vmem:[%s2] sm:$0xff]
        %v464 = vld [vmem:[%s2 + $0x8] sm:$0xff]
        %v465 = vld [vmem:[%s2 + $0x10] sm:$0xff]
        %v466 = vld [vmem:[%s2 + $0x18] sm:$0xff]
        %v467 = vld [vmem:[%s2 + $0x20] sm:$0xff]
        %v468 = vld [vmem:[%s2 + $0x28] sm:$0xff]
        %v469 = vld [vmem:[%s2 + $0x30] sm:$0xff]
        %v470 = vld [vmem:[%s2 + $0x38] sm:$0xff]
        %v471 = vld [vmem:[%s2 + $0x40] sm:$0xff]
        %v472 = vld [vmem:[%s2 + $0x48] sm:$0xff]
        %v473 = vld [vmem:[%s2 + $0x50] sm:$0xff]
        %v474 = vld [vmem:[%s2 + $0x58] sm:$0xff]
        %v475 = vld [vmem:[%s2 + $0x60] sm:$0xff]
        %v476 = vld [vmem:[%s2 + $0x68] sm:$0xff]
        %v477 = vld [vmem:[%s2 + $0x70] sm:$0xff]
        %v478 = vld [vmem:[%s2 + $0x78] sm:$0xff]
        %480 = vset.pattern.permute.xlu0 0
        %481 = vperm.xlu0 %480, %v463
        %v482 = vpop.permute.xlu0 %481
        %485 = vset.pattern.permute.xlu0 0
        %486 = vperm.xlu0 %485, %v464
        %v487 = vpop.permute.xlu0 %486
        %490 = vset.pattern.permute.xlu0 0
        %491 = vperm.xlu0 %490, %v465
        %v492 = vpop.permute.xlu0 %491
        %495 = vset.pattern.permute.xlu0 0
        %496 = vperm.xlu0 %495, %v466
        %v497 = vpop.permute.xlu0 %496
        %500 = vset.pattern.permute.xlu0 0
        %501 = vperm.xlu0 %500, %v467
        %v502 = vpop.permute.xlu0 %501
        %505 = vset.pattern.permute.xlu0 0
        %506 = vperm.xlu0 %505, %v468
        %v507 = vpop.permute.xlu0 %506
        %510 = vset.pattern.permute.xlu0 0
        %511 = vperm.xlu0 %510, %v469
        %v512 = vpop.permute.xlu0 %511
        %515 = vset.pattern.permute.xlu0 0
        %516 = vperm.xlu0 %515, %v470
        %v517 = vpop.permute.xlu0 %516
        %520 = vset.pattern.permute.xlu0 0
        %521 = vperm.xlu0 %520, %v471
        %v522 = vpop.permute.xlu0 %521
        %525 = vset.pattern.permute.xlu0 0
        %526 = vperm.xlu0 %525, %v472
        %v527 = vpop.permute.xlu0 %526
        %530 = vset.pattern.permute.xlu0 0
        %531 = vperm.xlu0 %530, %v473
        %v532 = vpop.permute.xlu0 %531
        %535 = vset.pattern.permute.xlu0 0
        %536 = vperm.xlu0 %535, %v474
        %v537 = vpop.permute.xlu0 %536
        %540 = vset.pattern.permute.xlu0 0
        %541 = vperm.xlu0 %540, %v475
        %v542 = vpop.permute.xlu0 %541
        %545 = vset.pattern.permute.xlu0 0
        %546 = vperm.xlu0 %545, %v476
        %v547 = vpop.permute.xlu0 %546
        %550 = vset.pattern.permute.xlu0 0
        %551 = vperm.xlu0 %550, %v477
        %v552 = vpop.permute.xlu0 %551
        %555 = vset.pattern.permute.xlu0 0
        %556 = vperm.xlu0 %555, %v478
        %v557 = vpop.permute.xlu0 %556
        %v559 = vadd.f32 %v447, %v482
        %v560 = vadd.f32 %v448, %v487
        %v561 = vadd.f32 %v449, %v492
        %v562 = vadd.f32 %v450, %v497
        %v563 = vadd.f32 %v451, %v502
        %v564 = vadd.f32 %v452, %v507
        %v565 = vadd.f32 %v453, %v512
        %v566 = vadd.f32 %v454, %v517
        %v567 = vadd.f32 %v455, %v522
        %v568 = vadd.f32 %v456, %v527
        %v569 = vadd.f32 %v457, %v532
        %v570 = vadd.f32 %v458, %v537
        %v571 = vadd.f32 %v459, %v542
        %v572 = vadd.f32 %v460, %v547
        %v573 = vadd.f32 %v461, %v552
        %v574 = vadd.f32 %v462, %v557
        %v575 = vmax.f32 %v559, 0.0
        %v576 = vmax.f32 %v560, 0.0
        %v577 = vmax.f32 %v561, 0.0
        %v578 = vmax.f32 %v562, 0.0
        %v579 = vmax.f32 %v563, 0.0
        %v580 = vmax.f32 %v564, 0.0
        %v581 = vmax.f32 %v565, 0.0
        %v582 = vmax.f32 %v566, 0.0
        %v583 = vmax.f32 %v567, 0.0
        %v584 = vmax.f32 %v568, 0.0
        %v585 = vmax.f32 %v569, 0.0
        %v586 = vmax.f32 %v570, 0.0
        %v587 = vmax.f32 %v571, 0.0
        %v588 = vmax.f32 %v572, 0.0
        %v589 = vmax.f32 %v573, 0.0
        %v590 = vmax.f32 %v574, 0.0
        %v591 = vlaneseq
        %v592 = vand.u32 %v591, 127
        %vm593 = vcmp.lt.s32.totalorder %v592, 0
        %v594 = vsub.s32 0, %v592
        %v595 = vsel %vm593, %v594, %v592
        %v596 = vshrl.u32 %v595, 5
        %v597 = vand.u32 %v595, 31
        %v598 = vsub.s32 0, %v597
        %v599 = vsel %vm593, %v598, %v597
        %vm600 = vcmp.ne.s32.totalorder %v599, 0
        %vm601 = vcmp.lt.s32.totalorder %v599, 0
        %vm602 = vmand %vm601, %vm600
        %v603 = vadd.s32 %v599, 32
        %v604 = vsel %vm602, %v603, %v599
        %605 = vrot.lane.b32.xlu0 %v575, 1
        %v606 = vpop.permute.xlu0 %605
        %607 = vrot.lane.b32.xlu0 %v576, 1
        %v608 = vpop.permute.xlu0 %607
        %609 = vrot.lane.b32.xlu0 %v577, 1
        %v610 = vpop.permute.xlu0 %609
        %611 = vrot.lane.b32.xlu0 %v578, 1
        %v612 = vpop.permute.xlu0 %611
        %613 = vrot.lane.b32.xlu0 %v579, 1
        %v614 = vpop.permute.xlu0 %613
        %615 = vrot.lane.b32.xlu0 %v580, 1
        %v616 = vpop.permute.xlu0 %615
        %617 = vrot.lane.b32.xlu0 %v581, 1
        %v618 = vpop.permute.xlu0 %617
        %619 = vrot.lane.b32.xlu0 %v582, 1
        %v620 = vpop.permute.xlu0 %619
        %621 = vrot.lane.b32.xlu0 %v583, 1
        %v622 = vpop.permute.xlu0 %621
        %623 = vrot.lane.b32.xlu0 %v584, 1
        %v624 = vpop.permute.xlu0 %623
        %625 = vrot.lane.b32.xlu0 %v585, 1
        %v626 = vpop.permute.xlu0 %625
        %627 = vrot.lane.b32.xlu0 %v586, 1
        %v628 = vpop.permute.xlu0 %627
        %629 = vrot.lane.b32.xlu0 %v587, 1
        %v630 = vpop.permute.xlu0 %629
        %631 = vrot.lane.b32.xlu0 %v588, 1
        %v632 = vpop.permute.xlu0 %631
        %633 = vrot.lane.b32.xlu0 %v589, 1
        %v634 = vpop.permute.xlu0 %633
        %635 = vrot.lane.b32.xlu0 %v590, 1
        %v636 = vpop.permute.xlu0 %635
        %v637 = vadd.s32 %v604, 4294967295
        %vm638 = vcmp.ge.s32.totalorder %v637, 0
        %vm639 = vcmp.lt.s32.totalorder %v637, 32
        %vm640 = vmand %vm638, %vm639
        %v641 = vsel %vm640, %v606, 0.0
        %v642 = vsel %vm640, %v608, 0.0
        %v643 = vsel %vm640, %v610, 0.0
        %v644 = vsel %vm640, %v612, 0.0
        %v645 = vsel %vm640, %v614, 0.0
        %v646 = vsel %vm640, %v616, 0.0
        %v647 = vsel %vm640, %v618, 0.0
        %v648 = vsel %vm640, %v620, 0.0
        %v649 = vsel %vm640, %v622, 0.0
        %v650 = vsel %vm640, %v624, 0.0
        %v651 = vsel %vm640, %v626, 0.0
        %v652 = vsel %vm640, %v628, 0.0
        %v653 = vsel %vm640, %v630, 0.0
        %v654 = vsel %vm640, %v632, 0.0
        %v655 = vsel %vm640, %v634, 0.0
        %v656 = vsel %vm640, %v636, 0.0
        %v657 = vpack.c.bf16 %v641, %v641
        %v658 = vpack.c.bf16 %v642, %v642
        %v659 = vpack.c.bf16 %v643, %v643
        %v660 = vpack.c.bf16 %v644, %v644
        %v661 = vpack.c.bf16 %v645, %v645
        %v662 = vpack.c.bf16 %v646, %v646
        %v663 = vpack.c.bf16 %v647, %v647
        %v664 = vpack.c.bf16 %v648, %v648
        %v665 = vpack.c.bf16 %v649, %v649
        %v666 = vpack.c.bf16 %v650, %v650
        %v667 = vpack.c.bf16 %v651, %v651
        %v668 = vpack.c.bf16 %v652, %v652
        %v669 = vpack.c.bf16 %v653, %v653
        %v670 = vpack.c.bf16 %v654, %v654
        %v671 = vpack.c.bf16 %v655, %v655
        %v672 = vpack.c.bf16 %v656, %v656
        %v673 = vpack.c.bf16 %v575, %v575
        %v674 = vpack.c.bf16 %v576, %v576
        %v675 = vpack.c.bf16 %v577, %v577
        %v676 = vpack.c.bf16 %v578, %v578
        %v677 = vpack.c.bf16 %v579, %v579
        %v678 = vpack.c.bf16 %v580, %v580
        %v679 = vpack.c.bf16 %v581, %v581
        %v680 = vpack.c.bf16 %v582, %v582
        %v681 = vpack.c.bf16 %v583, %v583
        %v682 = vpack.c.bf16 %v584, %v584
        %v683 = vpack.c.bf16 %v585, %v585
        %v684 = vpack.c.bf16 %v586, %v586
        %v685 = vpack.c.bf16 %v587, %v587
        %v686 = vpack.c.bf16 %v588, %v588
        %v687 = vpack.c.bf16 %v589, %v589
        %v688 = vpack.c.bf16 %v590, %v590
        %689 = vrot.lane.b32.xlu0 %v575, 127
        %v690 = vpop.permute.xlu0 %689
        %691 = vrot.lane.b32.xlu0 %v576, 127
        %v692 = vpop.permute.xlu0 %691
        %693 = vrot.lane.b32.xlu0 %v577, 127
        %v694 = vpop.permute.xlu0 %693
        %695 = vrot.lane.b32.xlu0 %v578, 127
        %v696 = vpop.permute.xlu0 %695
        %697 = vrot.lane.b32.xlu0 %v579, 127
        %v698 = vpop.permute.xlu0 %697
        %699 = vrot.lane.b32.xlu0 %v580, 127
        %v700 = vpop.permute.xlu0 %699
        %701 = vrot.lane.b32.xlu0 %v581, 127
        %v702 = vpop.permute.xlu0 %701
        %703 = vrot.lane.b32.xlu0 %v582, 127
        %v704 = vpop.permute.xlu0 %703
        %705 = vrot.lane.b32.xlu0 %v583, 127
        %v706 = vpop.permute.xlu0 %705
        %707 = vrot.lane.b32.xlu0 %v584, 127
        %v708 = vpop.permute.xlu0 %707
        %709 = vrot.lane.b32.xlu0 %v585, 127
        %v710 = vpop.permute.xlu0 %709
        %711 = vrot.lane.b32.xlu0 %v586, 127
        %v712 = vpop.permute.xlu0 %711
        %713 = vrot.lane.b32.xlu0 %v587, 127
        %v714 = vpop.permute.xlu0 %713
        %715 = vrot.lane.b32.xlu0 %v588, 127
        %v716 = vpop.permute.xlu0 %715
        %717 = vrot.lane.b32.xlu0 %v589, 127
        %v718 = vpop.permute.xlu0 %717
        %719 = vrot.lane.b32.xlu0 %v590, 127
        %v720 = vpop.permute.xlu0 %719
        %v721 = vadd.s32 %v604, 1
        %vm722 = vcmp.ge.s32.totalorder %v721, 0
        %vm723 = vcmp.lt.s32.totalorder %v721, 32
        %vm724 = vmand %vm722, %vm723
        %v725 = vsel %vm724, %v690, 0.0
        %v726 = vsel %vm724, %v692, 0.0
        %v727 = vsel %vm724, %v694, 0.0
        %v728 = vsel %vm724, %v696, 0.0
        %v729 = vsel %vm724, %v698, 0.0
        %v730 = vsel %vm724, %v700, 0.0
        %v731 = vsel %vm724, %v702, 0.0
        %v732 = vsel %vm724, %v704, 0.0
        %v733 = vsel %vm724, %v706, 0.0
        %v734 = vsel %vm724, %v708, 0.0
        %v735 = vsel %vm724, %v710, 0.0
        %v736 = vsel %vm724, %v712, 0.0
        %v737 = vsel %vm724, %v714, 0.0
        %v738 = vsel %vm724, %v716, 0.0
        %v739 = vsel %vm724, %v718, 0.0
        %v740 = vsel %vm724, %v720, 0.0
        %v741 = vpack.c.bf16 %v725, %v725
        %v742 = vpack.c.bf16 %v726, %v726
        %v743 = vpack.c.bf16 %v727, %v727
        %v744 = vpack.c.bf16 %v728, %v728
        %v745 = vpack.c.bf16 %v729, %v729
        %v746 = vpack.c.bf16 %v730, %v730
        %v747 = vpack.c.bf16 %v731, %v731
        %v748 = vpack.c.bf16 %v732, %v732
        %v749 = vpack.c.bf16 %v733, %v733
        %v750 = vpack.c.bf16 %v734, %v734
        %v751 = vpack.c.bf16 %v735, %v735
        %v752 = vpack.c.bf16 %v736, %v736
        %v753 = vpack.c.bf16 %v737, %v737
        %v754 = vpack.c.bf16 %v738, %v738
        %v755 = vpack.c.bf16 %v739, %v739
        %v756 = vpack.c.bf16 %v740, %v740
        %v773 = vunpack.c.l.b16 %v657
        %v774 = vunpack.c.l.b16 %v658
        %v775 = vunpack.c.l.b16 %v659
        %v776 = vunpack.c.l.b16 %v660
        %v777 = vunpack.c.l.b16 %v661
        %v778 = vunpack.c.l.b16 %v662
        %v779 = vunpack.c.l.b16 %v663
        %v780 = vunpack.c.l.b16 %v664
        %v781 = vunpack.c.l.b16 %v665
        %v782 = vunpack.c.l.b16 %v666
        %v783 = vunpack.c.l.b16 %v667
        %v784 = vunpack.c.l.b16 %v668
        %v785 = vunpack.c.l.b16 %v669
        %v786 = vunpack.c.l.b16 %v670
        %v787 = vunpack.c.l.b16 %v671
        %v788 = vunpack.c.l.b16 %v672
        %v789 = vpack.c.b16 %v774, %v773
        %v790 = vpack.c.b16 %v776, %v775
        %v791 = vpack.c.b16 %v778, %v777
        %v792 = vpack.c.b16 %v780, %v779
        %v793 = vpack.c.b16 %v782, %v781
        %v794 = vpack.c.b16 %v784, %v783
        %v795 = vpack.c.b16 %v786, %v785
        %v796 = vpack.c.b16 %v788, %v787
        %v821 = vunpack.c.l.b16 %v673
        %v822 = vunpack.c.l.b16 %v674
        %v823 = vunpack.c.l.b16 %v675
        %v824 = vunpack.c.l.b16 %v676
        %v825 = vunpack.c.l.b16 %v677
        %v826 = vunpack.c.l.b16 %v678
        %v827 = vunpack.c.l.b16 %v679
        %v828 = vunpack.c.l.b16 %v680
        %v829 = vunpack.c.l.b16 %v681
        %v830 = vunpack.c.l.b16 %v682
        %v831 = vunpack.c.l.b16 %v683
        %v832 = vunpack.c.l.b16 %v684
        %v833 = vunpack.c.l.b16 %v685
        %v834 = vunpack.c.l.b16 %v686
        %v835 = vunpack.c.l.b16 %v687
        %v836 = vunpack.c.l.b16 %v688
        %v837 = vpack.c.b16 %v822, %v821
        %v838 = vpack.c.b16 %v824, %v823
        %v839 = vpack.c.b16 %v826, %v825
        %v840 = vpack.c.b16 %v828, %v827
        %v841 = vpack.c.b16 %v830, %v829
        %v842 = vpack.c.b16 %v832, %v831
        %v843 = vpack.c.b16 %v834, %v833
        %v844 = vpack.c.b16 %v836, %v835
        %v869 = vunpack.c.l.b16 %v741
        %v870 = vunpack.c.l.b16 %v742
        %v871 = vunpack.c.l.b16 %v743
        %v872 = vunpack.c.l.b16 %v744
        %v873 = vunpack.c.l.b16 %v745
        %v874 = vunpack.c.l.b16 %v746
        %v875 = vunpack.c.l.b16 %v747
        %v876 = vunpack.c.l.b16 %v748
        %v877 = vunpack.c.l.b16 %v749
        %v878 = vunpack.c.l.b16 %v750
        %v879 = vunpack.c.l.b16 %v751
        %v880 = vunpack.c.l.b16 %v752
        %v881 = vunpack.c.l.b16 %v753
        %v882 = vunpack.c.l.b16 %v754
        %v883 = vunpack.c.l.b16 %v755
        %v884 = vunpack.c.l.b16 %v756
        %v885 = vpack.c.b16 %v870, %v869
        %v886 = vpack.c.b16 %v872, %v871
        %v887 = vpack.c.b16 %v874, %v873
        %v888 = vpack.c.b16 %v876, %v875
        %v889 = vpack.c.b16 %v878, %v877
        %v890 = vpack.c.b16 %v880, %v879
        %v891 = vpack.c.b16 %v882, %v881
        %v892 = vpack.c.b16 %v884, %v883
        %v901 = vld [vmem:[#allocation3] sm:$0xff]
        %v902 = vld [vmem:[#allocation3 + $0x8] sm:$0xf]
        %v903 = vld [vmem:[#allocation3 + $0xc] sm:$0xff]
        %v904 = vld [vmem:[#allocation3 + $0x14] sm:$0xf]
        %v905 = vld [vmem:[#allocation3 + $0x18] sm:$0xff]
        %v906 = vld [vmem:[#allocation3 + $0x20] sm:$0xf]
        %v907 = vld [vmem:[#allocation3 + $0x24] sm:$0xff]
        %v908 = vld [vmem:[#allocation3 + $0x2c] sm:$0xf]
        %v909 = vld [vmem:[#allocation3 + $0x30] sm:$0xff]
        %v910 = vld [vmem:[#allocation3 + $0x38] sm:$0xf]
        %v911 = vld [vmem:[#allocation3 + $0x3c] sm:$0xff]
        %v912 = vld [vmem:[#allocation3 + $0x44] sm:$0xf]
        %v913 = vld [vmem:[#allocation3 + $0x48] sm:$0xff]
        %v914 = vld [vmem:[#allocation3 + $0x50] sm:$0xf]
        %v915 = vld [vmem:[#allocation3 + $0x54] sm:$0xff]
        %v916 = vld [vmem:[#allocation3 + $0x5c] sm:$0xf]
        %v917 = vld [vmem:[#allocation3 + $0x60] sm:$0xff]
        %v918 = vld [vmem:[#allocation3 + $0x68] sm:$0xf]
        %v919 = vld [vmem:[#allocation3 + $0x6c] sm:$0xff]
        %v920 = vld [vmem:[#allocation3 + $0x74] sm:$0xf]
        %v921 = vld [vmem:[#allocation3 + $0x78] sm:$0xff]
        %v922 = vld [vmem:[#allocation3 + $0x80] sm:$0xf]
        %v923 = vld [vmem:[#allocation3 + $0x84] sm:$0xff]
        %v924 = vld [vmem:[#allocation3 + $0x8c] sm:$0xf]
        %v925 = vld [vmem:[#allocation3 + $0x90] sm:$0xff]
        %v926 = vld [vmem:[#allocation3 + $0x98] sm:$0xf]
        %v927 = vld [vmem:[#allocation3 + $0x9c] sm:$0xff]
        %v928 = vld [vmem:[#allocation3 + $0xa4] sm:$0xf]
        %v929 = vld [vmem:[#allocation3 + $0xa8] sm:$0xff]
        %v930 = vld [vmem:[#allocation3 + $0xb0] sm:$0xf]
        %v931 = vld [vmem:[#allocation3 + $0xb4] sm:$0xff]
        %v932 = vld [vmem:[#allocation3 + $0xbc] sm:$0xf]
        %v933 = vld [vmem:[%s4] sm:$0xff]
        %v934 = vld [vmem:[%s4 + $0x8] sm:$0xff]
        %v935 = vld [vmem:[%s4 + $0x10] sm:$0xff]
        %v936 = vld [vmem:[%s4 + $0x18] sm:$0xff]
        %v937 = vld [vmem:[%s4 + $0x20] sm:$0xff]
        %v938 = vld [vmem:[%s4 + $0x28] sm:$0xff]
        %v939 = vld [vmem:[%s4 + $0x30] sm:$0xff]
        %v940 = vld [vmem:[%s4 + $0x38] sm:$0xff]
        %v941 = vld [vmem:[%s4 + $0x40] sm:$0xff]
        %v942 = vld [vmem:[%s4 + $0x48] sm:$0xff]
        %v943 = vld [vmem:[%s4 + $0x50] sm:$0xff]
        %v944 = vld [vmem:[%s4 + $0x58] sm:$0xff]
        %v945 = vld [vmem:[%s4 + $0x60] sm:$0xff]
        %v946 = vld [vmem:[%s4 + $0x68] sm:$0xff]
        %v947 = vld [vmem:[%s4 + $0x70] sm:$0xff]
        %v948 = vld [vmem:[%s4 + $0x78] sm:$0xff]
        %950 = vset.pattern.permute.xlu0 0
        %951 = vperm.xlu0 %950, %v933
        %v952 = vpop.permute.xlu0 %951
        %955 = vset.pattern.permute.xlu0 0
        %956 = vperm.xlu0 %955, %v934
        %v957 = vpop.permute.xlu0 %956
        %960 = vset.pattern.permute.xlu0 0
        %961 = vperm.xlu0 %960, %v935
        %v962 = vpop.permute.xlu0 %961
        %965 = vset.pattern.permute.xlu0 0
        %966 = vperm.xlu0 %965, %v936
        %v967 = vpop.permute.xlu0 %966
        %970 = vset.pattern.permute.xlu0 0
        %971 = vperm.xlu0 %970, %v937
        %v972 = vpop.permute.xlu0 %971
        %975 = vset.pattern.permute.xlu0 0
        %976 = vperm.xlu0 %975, %v938
        %v977 = vpop.permute.xlu0 %976
        %980 = vset.pattern.permute.xlu0 0
        %981 = vperm.xlu0 %980, %v939
        %v982 = vpop.permute.xlu0 %981
        %985 = vset.pattern.permute.xlu0 0
        %986 = vperm.xlu0 %985, %v940
        %v987 = vpop.permute.xlu0 %986
        %990 = vset.pattern.permute.xlu0 0
        %991 = vperm.xlu0 %990, %v941
        %v992 = vpop.permute.xlu0 %991
        %995 = vset.pattern.permute.xlu0 0
        %996 = vperm.xlu0 %995, %v942
        %v997 = vpop.permute.xlu0 %996
        %1000 = vset.pattern.permute.xlu0 0
        %1001 = vperm.xlu0 %1000, %v943
        %v1002 = vpop.permute.xlu0 %1001
        %1005 = vset.pattern.permute.xlu0 0
        %1006 = vperm.xlu0 %1005, %v944
        %v1007 = vpop.permute.xlu0 %1006
        %1010 = vset.pattern.permute.xlu0 0
        %1011 = vperm.xlu0 %1010, %v945
        %v1012 = vpop.permute.xlu0 %1011
        %1015 = vset.pattern.permute.xlu0 0
        %1016 = vperm.xlu0 %1015, %v946
        %v1017 = vpop.permute.xlu0 %1016
        %1020 = vset.pattern.permute.xlu0 0
        %1021 = vperm.xlu0 %1020, %v947
        %v1022 = vpop.permute.xlu0 %1021
        %1025 = vset.pattern.permute.xlu0 0
        %1026 = vperm.xlu0 %1025, %v948
        %v1027 = vpop.permute.xlu0 %1026
        %v1061 = vunpack.c.l.b16 %v901
        %v1062 = vunpack.c.h.b16 %v901
        %v1063 = vunpack.c.l.b16 %v902
        %v1064 = vunpack.c.l.b16 %v903
        %v1065 = vunpack.c.h.b16 %v903
        %v1066 = vunpack.c.l.b16 %v904
        %v1067 = vunpack.c.l.b16 %v905
        %v1068 = vunpack.c.h.b16 %v905
        %v1069 = vunpack.c.l.b16 %v906
        %v1070 = vunpack.c.l.b16 %v907
        %v1071 = vunpack.c.h.b16 %v907
        %v1072 = vunpack.c.l.b16 %v908
        %v1073 = vunpack.c.l.b16 %v909
        %v1074 = vunpack.c.h.b16 %v909
        %v1075 = vunpack.c.l.b16 %v910
        %v1076 = vunpack.c.l.b16 %v911
        %v1077 = vunpack.c.h.b16 %v911
        %v1078 = vunpack.c.l.b16 %v912
        %v1079 = vunpack.c.l.b16 %v913
        %v1080 = vunpack.c.h.b16 %v913
        %v1081 = vunpack.c.l.b16 %v914
        %v1082 = vunpack.c.l.b16 %v915
        %v1083 = vunpack.c.h.b16 %v915
        %v1084 = vunpack.c.l.b16 %v916
        %v1085 = vunpack.c.l.b16 %v917
        %v1086 = vunpack.c.h.b16 %v917
        %v1087 = vunpack.c.l.b16 %v918
        %v1088 = vunpack.c.l.b16 %v919
        %v1089 = vunpack.c.h.b16 %v919
        %v1090 = vunpack.c.l.b16 %v920
        %v1091 = vunpack.c.l.b16 %v921
        %v1092 = vunpack.c.h.b16 %v921
        %v1093 = vunpack.c.l.b16 %v922
        %v1094 = vunpack.c.l.b16 %v923
        %v1095 = vunpack.c.h.b16 %v923
        %v1096 = vunpack.c.l.b16 %v924
        %v1097 = vunpack.c.l.b16 %v925
        %v1098 = vunpack.c.h.b16 %v925
        %v1099 = vunpack.c.l.b16 %v926
        %v1100 = vunpack.c.l.b16 %v927
        %v1101 = vunpack.c.h.b16 %v927
        %v1102 = vunpack.c.l.b16 %v928
        %v1103 = vunpack.c.l.b16 %v929
        %v1104 = vunpack.c.h.b16 %v929
        %v1105 = vunpack.c.l.b16 %v930
        %v1106 = vunpack.c.l.b16 %v931
        %v1107 = vunpack.c.h.b16 %v931
        %v1108 = vunpack.c.l.b16 %v932
        %v1109 = vpack.c.b16 %v1064, %v1061
        %v1110 = vpack.c.b16 %v1065, %v1062
        %v1111 = vpack.c.b16 %v1066, %v1063
        %v1112 = vpack.c.b16 %v1070, %v1067
        %v1113 = vpack.c.b16 %v1071, %v1068
        %v1114 = vpack.c.b16 %v1072, %v1069
        %v1115 = vpack.c.b16 %v1076, %v1073
        %v1116 = vpack.c.b16 %v1077, %v1074
        %v1117 = vpack.c.b16 %v1078, %v1075
        %v1118 = vpack.c.b16 %v1082, %v1079
        %v1119 = vpack.c.b16 %v1083, %v1080
        %v1120 = vpack.c.b16 %v1084, %v1081
        %v1121 = vpack.c.b16 %v1088, %v1085
        %v1122 = vpack.c.b16 %v1089, %v1086
        %v1123 = vpack.c.b16 %v1090, %v1087
        %v1124 = vpack.c.b16 %v1094, %v1091
        %v1125 = vpack.c.b16 %v1095, %v1092
        %v1126 = vpack.c.b16 %v1096, %v1093
        %v1127 = vpack.c.b16 %v1100, %v1097
        %v1128 = vpack.c.b16 %v1101, %v1098
        %v1129 = vpack.c.b16 %v1102, %v1099
        %v1130 = vpack.c.b16 %v1106, %v1103
        %v1131 = vpack.c.b16 %v1107, %v1104
        %v1132 = vpack.c.b16 %v1108, %v1105
        %1157 = vmatpush.bf16.msra.mxu0 %v796
        %1158 = vmatpush.bf16.msra.mxu0 %v795
        %1159 = vmatpush.bf16.msra.mxu0 %v794
        %1160 = vmatpush.bf16.msra.mxu0 %v793
        %1161 = vmatpush.bf16.msra.mxu0 %v792
        %1162 = vmatpush.bf16.msra.mxu0 %v791
        %1163 = vmatpush.bf16.msra.mxu0 %v790
        %1164 = vmatpush.bf16.msra.mxu0 %v789
        %1165 = vmatmul.bf16.gmra.mxu0 %v1109
        %v1166 = vpop.f32.mrf.mxu0
        %v1167 = vadd.f32 %v952, %v1166
        %v1168 = vpop.f32.mrf.mxu0
        %v1169 = vadd.f32 %v957, %v1168
        %1170 = vmatmul.bf16.gmra.mxu0 %v1112
        %v1171 = vpop.f32.mrf.mxu0
        %v1172 = vadd.f32 %v962, %v1171
        %v1173 = vpop.f32.mrf.mxu0
        %v1174 = vadd.f32 %v967, %v1173
        %1175 = vmatmul.bf16.gmra.mxu0 %v1115
        %v1176 = vpop.f32.mrf.mxu0
        %v1177 = vadd.f32 %v972, %v1176
        %v1178 = vpop.f32.mrf.mxu0
        %v1179 = vadd.f32 %v977, %v1178
        %1180 = vmatmul.bf16.gmra.mxu0 %v1118
        %v1181 = vpop.f32.mrf.mxu0
        %v1182 = vadd.f32 %v982, %v1181
        %v1183 = vpop.f32.mrf.mxu0
        %v1184 = vadd.f32 %v987, %v1183
        %1185 = vmatmul.bf16.gmra.mxu0 %v1121
        %v1186 = vpop.f32.mrf.mxu0
        %v1187 = vadd.f32 %v992, %v1186
        %v1188 = vpop.f32.mrf.mxu0
        %v1189 = vadd.f32 %v997, %v1188
        %1190 = vmatmul.bf16.gmra.mxu0 %v1124
        %v1191 = vpop.f32.mrf.mxu0
        %v1192 = vadd.f32 %v1002, %v1191
        %v1193 = vpop.f32.mrf.mxu0
        %v1194 = vadd.f32 %v1007, %v1193
        %1195 = vmatmul.bf16.gmra.mxu0 %v1127
        %v1196 = vpop.f32.mrf.mxu0
        %v1197 = vadd.f32 %v1012, %v1196
        %v1198 = vpop.f32.mrf.mxu0
        %v1199 = vadd.f32 %v1017, %v1198
        %1200 = vmatmul.bf16.gmra.mxu0 %v1130
        %v1201 = vpop.f32.mrf.mxu0
        %v1202 = vadd.f32 %v1022, %v1201
        %v1203 = vpop.f32.mrf.mxu0
        %v1204 = vadd.f32 %v1027, %v1203
        %1205 = vdwg.mxu0
        %1206 = vmatpush.bf16.msra.mxu0 %v844
        %1207 = vmatpush.bf16.msra.mxu0 %v843
        %1208 = vmatpush.bf16.msra.mxu0 %v842
        %1209 = vmatpush.bf16.msra.mxu0 %v841
        %1210 = vmatpush.bf16.msra.mxu0 %v840
        %1211 = vmatpush.bf16.msra.mxu0 %v839
        %1212 = vmatpush.bf16.msra.mxu0 %v838
        %1213 = vmatpush.bf16.msra.mxu0 %v837
        %1214 = vmatmul.bf16.gmra.mxu0 %v1110
        %v1215 = vpop.f32.mrf.mxu0
        %v1216 = vadd.f32 %v1167, %v1215
        %v1217 = vpop.f32.mrf.mxu0
        %v1218 = vadd.f32 %v1169, %v1217
        %1219 = vmatmul.bf16.gmra.mxu0 %v1113
        %v1220 = vpop.f32.mrf.mxu0
        %v1221 = vadd.f32 %v1172, %v1220
        %v1222 = vpop.f32.mrf.mxu0
        %v1223 = vadd.f32 %v1174, %v1222
        %1224 = vmatmul.bf16.gmra.mxu0 %v1116
        %v1225 = vpop.f32.mrf.mxu0
        %v1226 = vadd.f32 %v1177, %v1225
        %v1227 = vpop.f32.mrf.mxu0
        %v1228 = vadd.f32 %v1179, %v1227
        %1229 = vmatmul.bf16.gmra.mxu0 %v1119
        %v1230 = vpop.f32.mrf.mxu0
        %v1231 = vadd.f32 %v1182, %v1230
        %v1232 = vpop.f32.mrf.mxu0
        %v1233 = vadd.f32 %v1184, %v1232
        %1234 = vmatmul.bf16.gmra.mxu0 %v1122
        %v1235 = vpop.f32.mrf.mxu0
        %v1236 = vadd.f32 %v1187, %v1235
        %v1237 = vpop.f32.mrf.mxu0
        %v1238 = vadd.f32 %v1189, %v1237
        %1239 = vmatmul.bf16.gmra.mxu0 %v1125
        %v1240 = vpop.f32.mrf.mxu0
        %v1241 = vadd.f32 %v1192, %v1240
        %v1242 = vpop.f32.mrf.mxu0
        %v1243 = vadd.f32 %v1194, %v1242
        %1244 = vmatmul.bf16.gmra.mxu0 %v1128
        %v1245 = vpop.f32.mrf.mxu0
        %v1246 = vadd.f32 %v1197, %v1245
        %v1247 = vpop.f32.mrf.mxu0
        %v1248 = vadd.f32 %v1199, %v1247
        %1249 = vmatmul.bf16.gmra.mxu0 %v1131
        %v1250 = vpop.f32.mrf.mxu0
        %v1251 = vadd.f32 %v1202, %v1250
        %v1252 = vpop.f32.mrf.mxu0
        %v1253 = vadd.f32 %v1204, %v1252
        %1254 = vdwg.mxu0
        %1255 = vmatpush.bf16.msra.mxu0 %v892
        %1256 = vmatpush.bf16.msra.mxu0 %v891
        %1257 = vmatpush.bf16.msra.mxu0 %v890
        %1258 = vmatpush.bf16.msra.mxu0 %v889
        %1259 = vmatpush.bf16.msra.mxu0 %v888
        %1260 = vmatpush.bf16.msra.mxu0 %v887
        %1261 = vmatpush.bf16.msra.mxu0 %v886
        %1262 = vmatpush.bf16.msra.mxu0 %v885
        %1263 = vmatmul.bf16.gmra.mxu0 %v1111
        %v1264 = vpop.f32.mrf.mxu0
        %v1265 = vadd.f32 %v1216, %v1264
        %v1266 = vpop.f32.mrf.mxu0
        %v1267 = vadd.f32 %v1218, %v1266
        %1268 = vmatmul.bf16.gmra.mxu0 %v1114
        %v1269 = vpop.f32.mrf.mxu0
        %v1270 = vadd.f32 %v1221, %v1269
        %v1271 = vpop.f32.mrf.mxu0
        %v1272 = vadd.f32 %v1223, %v1271
        %1273 = vmatmul.bf16.gmra.mxu0 %v1117
        %v1274 = vpop.f32.mrf.mxu0
        %v1275 = vadd.f32 %v1226, %v1274
        %v1276 = vpop.f32.mrf.mxu0
        %v1277 = vadd.f32 %v1228, %v1276
        %1278 = vmatmul.bf16.gmra.mxu0 %v1120
        %v1279 = vpop.f32.mrf.mxu0
        %v1280 = vadd.f32 %v1231, %v1279
        %v1281 = vpop.f32.mrf.mxu0
        %v1282 = vadd.f32 %v1233, %v1281
        %1283 = vmatmul.bf16.gmra.mxu0 %v1123
        %v1284 = vpop.f32.mrf.mxu0
        %v1285 = vadd.f32 %v1236, %v1284
        %v1286 = vpop.f32.mrf.mxu0
        %v1287 = vadd.f32 %v1238, %v1286
        %1288 = vmatmul.bf16.gmra.mxu0 %v1126
        %v1289 = vpop.f32.mrf.mxu0
        %v1290 = vadd.f32 %v1241, %v1289
        %v1291 = vpop.f32.mrf.mxu0
        %v1292 = vadd.f32 %v1243, %v1291
        %1293 = vmatmul.bf16.gmra.mxu0 %v1129
        %v1294 = vpop.f32.mrf.mxu0
        %v1295 = vadd.f32 %v1246, %v1294
        %v1296 = vpop.f32.mrf.mxu0
        %v1297 = vadd.f32 %v1248, %v1296
        %1298 = vmatmul.bf16.gmra.mxu0 %v1132
        %v1299 = vpop.f32.mrf.mxu0
        %v1300 = vadd.f32 %v1251, %v1299
        %v1301 = vpop.f32.mrf.mxu0
        %v1302 = vadd.f32 %v1253, %v1301
        %1303 = vdwg.mxu0
        %1304 = vst [vmem:[%s334] sm:$0xff] %v1265
        %1305 = vst [vmem:[%s334 + $0x8] sm:$0xff] %v1267
        %1306 = vst [vmem:[%s334 + $0x10] sm:$0xff] %v1270
        %1307 = vst [vmem:[%s334 + $0x18] sm:$0xff] %v1272
        %1308 = vst [vmem:[%s334 + $0x20] sm:$0xff] %v1275
        %1309 = vst [vmem:[%s334 + $0x28] sm:$0xff] %v1277
        %1310 = vst [vmem:[%s334 + $0x30] sm:$0xff] %v1280
        %1311 = vst [vmem:[%s334 + $0x38] sm:$0xff] %v1282
        %1312 = vst [vmem:[%s334 + $0x40] sm:$0xff] %v1285
        %1313 = vst [vmem:[%s334 + $0x48] sm:$0xff] %v1287
        %1314 = vst [vmem:[%s334 + $0x50] sm:$0xff] %v1290
        %1315 = vst [vmem:[%s334 + $0x58] sm:$0xff] %v1292
        %1316 = vst [vmem:[%s334 + $0x60] sm:$0xff] %v1295
        %1317 = vst [vmem:[%s334 + $0x68] sm:$0xff] %v1297
        %1318 = vst [vmem:[%s334 + $0x70] sm:$0xff] %v1300
        %1319 = vst [vmem:[%s334 + $0x78] sm:$0xff] %v1302
        %s1320 = sand.u32 %s138, 1
        %s1321 = scalar_lea.sflag [#allocation5], %s1320
        %s1322 = sand.u32 %s138, 1
        %s1323 = smul.addr %s1322, 128
        %s1324 = scalar_lea.vmem [#allocation6], %s1323
        // Predicated region
        $region83: #{tpu_custom_call.1} parent=73 // pred_check
          %p1325 = pneg %p148
        $region84: #{tpu_custom_call.1} parent=73 // pred_check_branch
          %1327 = sbr.rel (%p1325) target = $region86
        $region85: #{tpu_custom_call.1} parent=73 // pred_region
          %1329 = vsyncadd %s1321, 0
          %s1330 = smul.addr %s20, 8
          %s1331 = scalar_lea.hbm %s5, %s1330
          %s1332 = sshll.u32 %s1324, 4
          %s1333 = int_to_ptr.vmem [resolvable:$true] %s1332
          %s1334 = sshll.u32 %s1331, 4
          %s1335 = int_to_ptr.hbm [resolvable:$true] %s1334
          %1340 = dma.vmem_to_hbm [thread:$0]  %s1333, 2048, %s1335, %s1321, 128, 256, 8
        $region86: #{tpu_custom_call.1} parent=73 // pred_fallthru
          _
      $region74: #{tpu_custom_call.1} parent=5 // pred_fallthru
        _
      %p1341 = scmp.le.s32.totalorder 2, %s15
      // Predicated region
      $region87: #{tpu_custom_call.1} parent=5 // pred_check
        %p1342 = pneg %p1341
      $region88: #{tpu_custom_call.1} parent=5 // pred_check_branch
        %1344 = sbr.rel (%p1342) target = $region90
      $region89: #{tpu_custom_call.1} parent=5 // pred_region
        %s1345 = ssub.s32 %s15, 2
        // Predicated region
        $region91: #{tpu_custom_call.1} parent=89 // pred_check
          %p1346 = pneg %p154
        $region92: #{tpu_custom_call.1} parent=89 // pred_check_branch
          %1348 = sbr.rel (%p1346) target = $region94
        $region93: #{tpu_custom_call.1} parent=89 // pred_region
          %s1349 = sand.u32 %s139, 1
          %s1350 = scalar_lea.sflag [#allocation5], %s1349
          %s1351 = sand.u32 %s139, 1
          %s1352 = smul.addr %s1351, 128
          %s1353 = scalar_lea.vmem [#allocation6], %s1352
          %1355 = dma.done %s1350, 2048
        $region94: #{tpu_custom_call.1} parent=89 // pred_fallthru
          _
      $region90: #{tpu_custom_call.1} parent=5 // pred_fallthru
        _
    $region6: #{tpu_custom_call.1} parent=1 // loop_footer
      %s19 = sadd.s32 1, %s15
    $region7: #{tpu_custom_call.1} parent=1 // loop_footer_branch
      %14 = sbr.rel target = $region3
    $region8: #{tpu_custom_call.1} parent=1 // loop_exit
      _
    %1356 = vsyncpa [#allocation4], 1
    %s1357 = scalar_lea.sflag [#allocation4], 1
    %1358 = vsyncpa %s1357, 1
    %1359 = vsyncpa [#allocation5], 1
    %s1360 = scalar_lea.sflag [#allocation5], 1
    %1361 = vsyncpa %s1360, 1

</llo_original>
